<compile_context>
chip_gen: v7x
topology: tpu7x:2x2x1
jax: 0.10.0
libtpu: 0.0.40
codegen_flags: <defaults>
</compile_context>

<pallas_src>
import math

import jax
import jax.numpy as jnp
from jax.experimental import pallas as pl
from jax.experimental.pallas import tpu as pltpu


def _first_layer_kernel(x_ref, w_ref, o_ref):
    # relu(weight) on the VPU, broadcast over sublanes; single elementwise pass.
    w = jnp.maximum(w_ref[...], jnp.zeros_like(w_ref[...]))      # (1, Fp)
    o_ref[...] = (x_ref[...] * w).astype(o_ref.dtype)


def _pack_factor(n_features: int, m_rows: int) -> int:
    """Smallest p such that (n_features * p) % 128 == 0, if p divides m_rows."""
    p = 128 // math.gcd(n_features, 128)
    if p > 1 and m_rows % p == 0:
        return p
    return 1


def _choose_tile_m(m_rows: int, row_bytes: int, target_bytes: int = 4 << 20) -> int:
    """Row-tile aiming for ~target_bytes per block; multiple of 8 when possible."""
    tile = max(1, target_bytes // max(row_bytes, 1))
    if tile >= m_rows:
        # Whole slab fits in one block: split into >=2 blocks (multiple of 8)
        # when rows allow it so the parallel axis can shard across 2 TCs (v7x).
        if m_rows >= 16:
            return max(8, ((m_rows // 2) // 8) * 8)
        return m_rows
    tile = max(8, (tile // 8) * 8)
    return min(tile, m_rows)


def first_layer(x: jax.Array, weight: jax.Array, *, donate_input: bool = False) -> jax.Array:
    """Applies output = x * relu(weight), weight broadcast over the last axis."""
    n_features = weight.shape[0]
    assert x.shape[-1] == n_features

    orig_shape = x.shape
    x2d = x.reshape(-1, n_features)                  # (M, F), metadata-only
    m = x2d.shape[0]

    # Lane-densify: pack p consecutive rows into one 128k-lane row.
    p = _pack_factor(n_features, m)
    f_packed = n_features * p
    m_packed = m // p
    x_packed = x2d.reshape(m_packed, f_packed)       # contiguous -> no copy
    w_row = jnp.tile(weight.astype(x.dtype), p).reshape(1, f_packed)

    # Tile rows into ~4 MiB blocks (<= 8 MiB keeps double-buffered in+out
    # comfortably inside the v7x scoped-VMEM default).
    row_bytes = f_packed * x.dtype.itemsize
    tile_m = _choose_tile_m(m_packed, row_bytes)
    grid = (pl.cdiv(m_packed, tile_m),)

    out_packed = pl.pallas_call(
        _first_layer_kernel,
        out_shape=jax.ShapeDtypeStruct((m_packed, f_packed), x.dtype),
        grid_spec=pltpu.PrefetchScalarGridSpec(
            num_scalar_prefetch=0,
            grid=grid,
            in_specs=[
                pl.BlockSpec((tile_m, f_packed), lambda i: (i, 0)),
                pl.BlockSpec((1, f_packed), lambda i: (0, 0)),   # stays resident
            ],
            out_specs=pl.BlockSpec((tile_m, f_packed), lambda i: (i, 0)),
        ),
        compiler_params=pltpu.CompilerParams(
            dimension_semantics=("parallel",),
        ),
        # Only safe/free when the caller actually donates x (e.g. via
        # jit(..., donate_argnums)); off by default.
        input_output_aliases=({0: 0} if donate_input else {}),
    )(x_packed, w_row)

    return out_packed.reshape(orig_shape)


if __name__ == "__main__":
    key = jax.random.PRNGKey(0)
    k_x, k_w = jax.random.split(key)

    B, S, F = 2, 8, 32  # n_features = 32
    x = jax.random.normal(k_x, (B, S, F), dtype=jnp.float32)

    # PyTorch init is weight = ones(n_features); perturb deterministically so
    # the ReLU actually clamps some entries.
    weight = jnp.ones((F,), dtype=jnp.float32) + 0.5 * jax.random.normal(
        k_w, (F,), dtype=jnp.float32
    )

    out = first_layer(x, weight)
    out = jax.block_until_ready(out)

    # Reference check in plain JAX.
    ref = x * jnp.maximum(weight, 0.0)
    assert out.shape == x.shape
    assert jnp.allclose(out, ref, atol=1e-6, rtol=1e-6)

    print("KERNEL_OK")
</pallas_src>

<mosaic_0001>
module attributes {stable_mosaic.version = 11 : i64} {
  func.func @_first_layer_kernel(%arg0: i32, %arg1: memref<4x128xf32, #tpu.memory_space<vmem>>, %arg2: memref<1x128xf32, #tpu.memory_space<vmem>>, %arg3: memref<4x128xf32, #tpu.memory_space<vmem>>) attributes {dimension_semantics = [#tpu.dimension_semantics<parallel>], iteration_bounds = array<i64: 1>, scalar_prefetch = 0 : i64, scratch_operands = 0 : i64, tpu.core_type = #tpu.core_type<tc>, window_params = [{transform_indices = @transform_0, window_bounds = array<i64: 4, 128>}, {pipeline_mode = #tpu.pipeline_mode<synchronous>, transform_indices = @transform_1, window_bounds = array<i64: 1, 128>}, {transform_indices = @transform_2, window_bounds = array<i64: 4, 128>}]} {
    %c0 = arith.constant 0 : index
    %c0_0 = arith.constant 0 : index
    %0 = vector.load %arg2[%c0, %c0_0] : memref<1x128xf32, #tpu.memory_space<vmem>>, vector<1x128xf32>
    %cst = arith.constant 0.000000e+00 : f32
    %1 = vector.broadcast %cst : f32 to vector<1x128xf32>
    %2 = arith.maximumf %0, %1 : vector<1x128xf32>
    %c0_1 = arith.constant 0 : index
    %c0_2 = arith.constant 0 : index
    %3 = vector.load %arg1[%c0_1, %c0_2] : memref<4x128xf32, #tpu.memory_space<vmem>>, vector<4x128xf32>
    %4 = vector.broadcast %2 : vector<1x128xf32> to vector<4x128xf32>
    %5 = arith.mulf %3, %4 : vector<4x128xf32>
    %c0_3 = arith.constant 0 : index
    %c0_4 = arith.constant 0 : index
    %6 = vector.load %arg3[%c0_3, %c0_4] : memref<4x128xf32, #tpu.memory_space<vmem>>, vector<4x128xf32>
    tpu.vector_store %arg3[%c0_3, %c0_4], %5 {strides = array<i32>} : memref<4x128xf32, #tpu.memory_space<vmem>>, vector<4x128xf32>,
    return
  }
  func.func @transform_0(%arg0: i32) -> (i32, i32) {
    %c0_i32 = arith.constant 0 : i32
    %c0_i32_0 = arith.constant 0 : i32
    return %arg0, %c0_i32 : i32, i32
  }
  func.func @transform_1(%arg0: i32) -> (i32, i32) {
    %c0_i32 = arith.constant 0 : i32
    %c0_i32_0 = arith.constant 0 : i32
    %c0_i32_1 = arith.constant 0 : i32
    return %c0_i32, %c0_i32_0 : i32, i32
  }
  func.func @transform_2(%arg0: i32) -> (i32, i32) {
    %c0_i32 = arith.constant 0 : i32
    %c0_i32_0 = arith.constant 0 : i32
    return %arg0, %c0_i32 : i32, i32
  }
}

</mosaic_0001>

<llo_original>
// kernel: tpu_custom_call.1
$region0: #{tpu_custom_call.1}
  #allocation0 [shape = 'u32[]', space=smem, size = 0x4, offset = 0x4, fixed_abs, tag = 'smem constant byte address 0x4 - core index']
  #allocation1 [shape = 'u32[144,128]{1,0:T(1,128)}', space=vmem, size = 0x12000, scoped, tag = 'internal scratch']
  %s0 = inlined_call_operand.hbm [shape: f32[4,128], index: 0, kind: input, shape index: {}]
  %s1 = inlined_call_operand.vmem [shape: f32[1,128], index: 1, kind: input, shape index: {}]
  %s2 = inlined_call_operand.hbm [shape: f32[4,128], index: 2, kind: output, shape index: {}]
  %s3 = sld [smem:[#allocation0]]
  $region22: #{tpu_custom_call.1} parent=0
    _
  %s5 = ssub.s32 1, %s3
  %s6 = scalar_select 0, %s5, %s3
  $region1: #{tpu_custom_call.1} parent=0
    #allocation2 [shape = 'u8[2048]{0}', space=vmem, size = 0x800, scoped, tag = 'input window, operand 0, single buffered']
    #allocation3 [shape = 's32[1]{0}', space=sflag, size = 0x4, scoped, tag = 'scoped memory for tpu_custom_call.1']
    #allocation4 [shape = 's32[1]{0}', space=sflag, size = 0x4, scoped, tag = 'scoped memory for tpu_custom_call.1']
    #allocation5 [shape = 'u8[2048]{0}', space=vmem, size = 0x800, scoped, tag = 'output window, operand 0, single buffered']
    %7 = vsyncpa [#allocation3], 0
    %8 = vsyncpa [#allocation4], 0
    // Predicated region
    $region2: #{tpu_custom_call.1} parent=1 // pred_check
      _
    $region3: #{tpu_custom_call.1} parent=1 // pred_check_branch
      %10 = sbr.rel (0) target = $region5
    $region4: #{tpu_custom_call.1} parent=1 // pred_region
      %s12 = ssub.s32 64, 64
      %13 = vsyncadd [#allocation3], %s12
      %s15 = sshll.u32 [#allocation2], 4
      %s16 = int_to_ptr.vmem [resolvable:$true] %s15
      %18 = dma.hbm_to_vmem [thread:$0]  %s0, 64, %s16, [#allocation3]
    $region5: #{tpu_custom_call.1} parent=1 // pred_fallthru
      _
    // Predicated region
    $region6: #{tpu_custom_call.1} parent=1 // pred_check
      _
    $region7: #{tpu_custom_call.1} parent=1 // pred_check_branch
      %20 = sbr.rel (0) target = $region9
    $region8: #{tpu_custom_call.1} parent=1 // pred_region
      _
    $region9: #{tpu_custom_call.1} parent=1 // pred_fallthru
      _
    // Predicated region
    $region10: #{tpu_custom_call.1} parent=1 // pred_check
      _
    $region11: #{tpu_custom_call.1} parent=1 // pred_check_branch
      %22 = sbr.rel (0) target = $region13
    $region12: #{tpu_custom_call.1} parent=1 // pred_region
      %23 = dma.done [#allocation3], 64
    $region13: #{tpu_custom_call.1} parent=1 // pred_fallthru
      _
    %v24 = vld [vmem:[%s1] sm:$0x1]
    %v25 = vmax.f32 %v24, 0.0
    %v26 = vld [vmem:[#allocation2] sm:$0xf]
    %v28 = vlaneseq
    %v29 = vshrl.u32 %v28, 7
    %v30 = vsub.s32 0, %v29
    %v31 = vrot.slane %v25, %v30
    %v33 = vmul.f32 %v26, %v31
    %34 = vst [vmem:[#allocation5] sm:$0xf] %v33
    // Predicated region
    $region14: #{tpu_custom_call.1} parent=1 // pred_check
      _
    $region15: #{tpu_custom_call.1} parent=1 // pred_check_branch
      %36 = sbr.rel (0) target = $region17
    $region16: #{tpu_custom_call.1} parent=1 // pred_region
      %s38 = ssub.s32 64, 64
      %39 = vsyncadd [#allocation4], %s38
      %s41 = sshll.u32 [#allocation5], 4
      %s42 = int_to_ptr.vmem [resolvable:$true] %s41
      %44 = dma.vmem_to_hbm [thread:$0]  %s42, 64, %s2, [#allocation4]
    $region17: #{tpu_custom_call.1} parent=1 // pred_fallthru
      _
    // Predicated region
    $region18: #{tpu_custom_call.1} parent=1 // pred_check
      _
    $region19: #{tpu_custom_call.1} parent=1 // pred_check_branch
      %46 = sbr.rel (0) target = $region21
    $region20: #{tpu_custom_call.1} parent=1 // pred_region
      %47 = dma.done [#allocation4], 64
    $region21: #{tpu_custom_call.1} parent=1 // pred_fallthru
      _
    %48 = vsyncpa [#allocation3], 1
    %49 = vsyncpa [#allocation4], 1

</llo_original>
